<compile_context>
chip_gen: v5e
topology: v5e:2x2
jax: 0.10.0
libtpu: 0.0.40
codegen_flags: <defaults>
</compile_context>

<pallas_src>
import numpy as np
import jax
import jax.numpy as jnp
from jax import lax
from jax.experimental import pallas as pl
from jax.experimental.pallas import tpu as pltpu

LOG10_INV = np.float32(1.0 / np.log(10.0))
LANE = 128


def _round_up(x, m):
    return ((x + m - 1) // m) * m


# ----------------------------------------------------------------------------
# Deterministic parameter construction (synthetic stand-ins for the buffers
# registered in the PyTorch module: hann window, DFT basis, mel filterbank).
# ----------------------------------------------------------------------------
def hann_window(n_fft):
    # torch.hann_window(n_fft) is periodic by default.
    n = np.arange(n_fft)
    return (0.5 * (1.0 - np.cos(2.0 * np.pi * n / n_fft))).astype(np.float32)


def mel_filterbank(n_mels, n_fft, sr=16000.0):
    # Deterministic triangular (HTK-style) mel filterbank; stands in for
    # assets/mel_filters.npz.  Shape: (n_mels, n_fft//2 + 1).
    n_freq = n_fft // 2 + 1

    def hz_to_mel(f):
        return 2595.0 * np.log10(1.0 + f / 700.0)

    def mel_to_hz(m):
        return 700.0 * (10.0 ** (m / 2595.0) - 1.0)

    mel_pts = np.linspace(hz_to_mel(0.0), hz_to_mel(sr / 2.0), n_mels + 2)
    hz_pts = mel_to_hz(mel_pts)
    bins = np.floor((n_fft + 1) * hz_pts / sr).astype(np.int64)
    fb = np.zeros((n_mels, n_freq), dtype=np.float32)
    for m in range(1, n_mels + 1):
        l, c, r = int(bins[m - 1]), int(bins[m]), int(bins[m + 1])
        for k in range(l, c):
            if c > l:
                fb[m - 1, k] = (k - l) / (c - l)
        for k in range(c, min(r, n_freq)):
            if r > c:
                fb[m - 1, k] = (r - k) / (r - c)
    return fb


def build_params(n_mels, n_fft, sr=16000.0):
    """Windowed + fused + lane-padded DFT basis and padded mel filterbank."""
    n_freq = n_fft // 2 + 1
    f_pad = _round_up(n_freq, LANE)
    m_pad = _round_up(n_mels, LANE)

    win = hann_window(n_fft)                                     # (n_fft,)
    n = np.arange(n_fft)[:, None].astype(np.float64)
    k = np.arange(n_freq)[None, :].astype(np.float64)
    ang = 2.0 * np.pi * n * k / n_fft
    cosb = (np.cos(ang) * win[:, None]).astype(np.float32)       # window folded in
    sinb = (np.sin(ang) * win[:, None]).astype(np.float32)

    # Fused (cos | sin) basis, transposed so it is the LHS of the MXU matmul and
    # zero-padded along the frequency axis to a multiple of 128.
    basis = np.zeros((2 * f_pad, n_fft), dtype=np.float32)
    basis[:n_freq] = cosb.T
    basis[f_pad:f_pad + n_freq] = sinb.T

    mel_fb = mel_filterbank(n_mels, n_fft, sr)                   # (n_mels, n_freq)
    mel_pad = np.zeros((m_pad, f_pad), dtype=np.float32)
    mel_pad[:n_mels, :n_freq] = mel_fb

    return dict(
        n_mels=n_mels, n_fft=n_fft, n_freq=n_freq, f_pad=f_pad, m_pad=m_pad,
        basis=jnp.asarray(basis).astype(jnp.bfloat16),           # bf16 MXU operand
        mel=jnp.asarray(mel_pad),                                # f32 (small matmul)
        window=jnp.asarray(win),
        mel_fb=jnp.asarray(mel_fb),
    )


# ----------------------------------------------------------------------------
# Pallas kernel: one grid step == (batch element, frame tile).
# ----------------------------------------------------------------------------
def _logmel_kernel(frames_ref, basis_ref, mel_ref, out_ref):
    # frames_ref: (1, n_fft, TF)      bf16, frame index on the lane axis
    # basis_ref : (2*F_pad, n_fft)    bf16, window folded in, cos|sin stacked
    # mel_ref   : (M_pad, F_pad)      f32
    # out_ref   : (1, M_pad, TF)      f32, un-normalized log10-mel
    frames = frames_ref[0]                                        # (n_fft, TF)

    # Single fused DFT matmul on the MXU (bf16 operands, f32 accumulation).
    spec = jnp.dot(basis_ref[...], frames,
                   preferred_element_type=jnp.float32)            # (2*F_pad, TF)
    f_pad = spec.shape[0] // 2
    re = spec[:f_pad]
    im = spec[f_pad:]
    power = re * re + im * im                                     # (F_pad, TF)

    # Mel projection, weight-stationary orientation: (M_pad,F_pad)@(F_pad,TF).
    mel = jnp.dot(mel_ref[...], power,
                  preferred_element_type=jnp.float32)             # (M_pad, TF)

    # log10 with clamp; output stays (M_pad, TF) -> lane-dense store, no transpose.
    out_ref[0] = jnp.log(jnp.maximum(mel, 1e-10)) * LOG10_INV


# ----------------------------------------------------------------------------
# Framing glue: (B, L) -> (B, n_fft, n_frames_pad), frames[b, f, t] = xp[b, t*hop+f].
# Built from ceil(n_fft/hop) static hop-strided views (no integer gather).
# ----------------------------------------------------------------------------
def _frame_flipped(xp, n_fft, hop, n_frames_pad):
    B, L = xp.shape
    n_q = -(-n_fft // hop)                       # ceil(n_fft / hop)
    need = (n_frames_pad + n_q - 1) * hop
    if L < need:
        xp = jnp.pad(xp, ((0, 0), (0, need - L)))
    pieces = []
    for q in range(n_q):
        chunk = xp[:, q * hop: q * hop + n_frames_pad * hop]
        chunk = chunk.reshape(B, n_frames_pad, hop)
        pieces.append(jnp.swapaxes(chunk, 1, 2))                  # (B, hop, n_frames_pad)
    return jnp.concatenate(pieces, axis=1)[:, :n_fft, :]


# ----------------------------------------------------------------------------
# Wrapper: reproduces LogMelSpectogram.forward(x, seq_len).
# ----------------------------------------------------------------------------
def log_mel_spectrogram(x, seq_len, params, *, hop_length, padding=0,
                        frame_tile=256):
    n_fft = params["n_fft"]
    n_mels = params["n_mels"]
    f_pad = params["f_pad"]
    m_pad = params["m_pad"]
    B = x.shape[0]

    # get_seq_len: floor(seq_len / hop_length) -> int
    out_seq_len = jnp.floor(seq_len.astype(jnp.float32) / hop_length).astype(jnp.int32)

    if padding > 0:
        x = jnp.pad(x, ((0, 0), (0, padding)))

    # torch.stft(center=True, pad_mode='reflect'): reflect-pad n_fft//2 each side.
    pad = n_fft // 2
    xp = jnp.pad(x, ((0, 0), (pad, pad)), mode="reflect")

    # torch gives 1 + T//hop frames; [..., :-1] drops the last one.
    n_frames = x.shape[1] // hop_length
    tf = min(frame_tile, _round_up(n_frames, LANE))               # multiple of 128
    n_frames_pad = _round_up(n_frames, tf)
    n_tiles = n_frames_pad // tf

    frames = _frame_flipped(xp, n_fft, hop_length, n_frames_pad).astype(jnp.bfloat16)
    # TODO(synk): build frame tiles in-kernel from xp (memory_space=pl.ANY, overlapping
    # DMA windows) to avoid materializing the (n_fft/hop)x-expanded frames copy in HBM.

    grid_spec = pltpu.PrefetchScalarGridSpec(
        num_scalar_prefetch=0,
        grid=(B, n_tiles),
        in_specs=[
            pl.BlockSpec((1, n_fft, tf), lambda b, t: (b, 0, t)),
            pl.BlockSpec((2 * f_pad, n_fft), lambda b, t: (0, 0)),
            pl.BlockSpec((m_pad, f_pad), lambda b, t: (0, 0)),
        ],
        out_specs=pl.BlockSpec((1, m_pad, tf), lambda b, t: (b, 0, t)),
    )

    logmel = pl.pallas_call(
        _logmel_kernel,
        out_shape=jax.ShapeDtypeStruct((B, m_pad, n_frames_pad), jnp.float32),
        grid_spec=grid_spec,
        compiler_params=pltpu.CompilerParams(
            dimension_semantics=("parallel", "parallel")),
    )(frames, params["basis"], params["mel"])

    # Finalize (tiny JAX elementwise pass): slice padding, per-batch dynamic-range
    # compression.  Done outside the kernel so frame tiles stay independent.
    logmel = logmel[:, :n_mels, :n_frames]
    gmax = jnp.max(logmel, axis=(1, 2), keepdims=True)
    logmel = jnp.maximum(logmel, gmax - 8.0)
    logmel = (logmel + 4.0) / 4.0
    return logmel, out_seq_len


# ----------------------------------------------------------------------------
# Pure-JAX reference (independent gather-based framing; same bf16 operand
# precision as the kernel's MXU path, f32 accumulation).
# ----------------------------------------------------------------------------
def _reference(x, params, *, hop_length, padding=0):
    n_fft = params["n_fft"]
    n_freq = params["n_freq"]
    f_pad = params["f_pad"]
    if padding > 0:
        x = jnp.pad(x, ((0, 0), (0, padding)))
    pad = n_fft // 2
    xp = jnp.pad(x, ((0, 0), (pad, pad)), mode="reflect")
    n_frames = x.shape[1] // hop_length
    idx = np.arange(n_frames)[:, None] * hop_length + np.arange(n_fft)[None, :]
    frames = xp[:, idx]                                           # (B, nF, n_fft)

    frames_q = frames.astype(jnp.bfloat16).astype(jnp.float32)
    basis_q = params["basis"].astype(jnp.float32)                 # windowed, bf16 values
    spec = jnp.einsum("btf,kf->bkt", frames_q, basis_q,
                      precision=lax.Precision.HIGHEST)            # (B, 2*F_pad, nF)
    re = spec[:, :n_freq]
    im = spec[:, f_pad:f_pad + n_freq]
    power = re * re + im * im
    mel = jnp.einsum("mk,bkt->bmt", params["mel_fb"], power,
                     precision=lax.Precision.HIGHEST)
    logmel = jnp.log10(jnp.maximum(mel, 1e-10))
    logmel = jnp.maximum(logmel, jnp.max(logmel, axis=(1, 2), keepdims=True) - 8.0)
    return (logmel + 4.0) / 4.0


if __name__ == "__main__":
    # Small shapes consistent with the module (whisper uses 400/160/80; scaled down).
    N_FFT = 128
    HOP_LENGTH = 64
    N_MELS = 16
    B, T = 2, 1024

    key = jax.random.PRNGKey(0)
    kx, _ = jax.random.split(key)
    x = jax.random.normal(kx, (B, T), dtype=jnp.float32)
    seq_len = jnp.array([float(T), float(T) * 0.75], dtype=jnp.float32)

    params = build_params(N_MELS, N_FFT)

    # Single jitted program: framing glue + pallas kernel + finalize fuse together
    # (static config is closed over, so shapes stay Python ints).
    @jax.jit
    def run(x, seq_len):
        return log_mel_spectrogram(x, seq_len, params,
                                   hop_length=HOP_LENGTH, padding=0)

    out, out_seq_len = run(x, seq_len)
    out = jax.block_until_ready(out)
    out_seq_len = jax.block_until_ready(out_seq_len)

    n_frames = T // HOP_LENGTH
    assert out.shape == (B, N_MELS, n_frames), out.shape
    assert out.dtype == jnp.float32

    ref = _reference(x, params, hop_length=HOP_LENGTH, padding=0)
    # Tolerance covers MXU-vs-XLA accumulation-order / f32-emulation differences;
    # bf16 operand rounding is identical on both sides.
    np.testing.assert_allclose(np.asarray(out), np.asarray(ref), rtol=1e-2, atol=1e-2)
    np.testing.assert_array_equal(
        np.asarray(out_seq_len),
        np.floor(np.asarray(seq_len) / HOP_LENGTH).astype(np.int32),
    )
    print("KERNEL_OK")
</pallas_src>

<mosaic_0001>
module attributes {stable_mosaic.version = 11 : i64} {
  func.func @_logmel_kernel(%arg0: i32, %arg1: i32, %arg2: memref<1x128x128xbf16, #tpu.memory_space<vmem>>, %arg3: memref<256x128xbf16, #tpu.memory_space<vmem>>, %arg4: memref<128x128xf32, #tpu.memory_space<vmem>>, %arg5: memref<1x128x128xf32, #tpu.memory_space<vmem>>) attributes {dimension_semantics = [#tpu.dimension_semantics<parallel>, #tpu.dimension_semantics<parallel>], iteration_bounds = array<i64: 2, 1>, scalar_prefetch = 0 : i64, scratch_operands = 0 : i64, tpu.core_type = #tpu.core_type<tc>, window_params = [{transform_indices = @transform_0, window_bounds = array<i64: 1, 128, 128>}, {pipeline_mode = #tpu.pipeline_mode<synchronous>, transform_indices = @transform_1, window_bounds = array<i64: 256, 128>}, {pipeline_mode = #tpu.pipeline_mode<synchronous>, transform_indices = @transform_2, window_bounds = array<i64: 128, 128>}, {transform_indices = @transform_3, window_bounds = array<i64: 1, 128, 128>}]} {
    %c0 = arith.constant 0 : index
    %c0_0 = arith.constant 0 : index
    %c0_1 = arith.constant 0 : index
    %0 = vector.load %arg2[%c0, %c0_0, %c0_1] : memref<1x128x128xbf16, #tpu.memory_space<vmem>>, vector<1x128x128xbf16>
    %1 = vector.shape_cast %0 : vector<1x128x128xbf16> to vector<128x128xbf16>
    %c0_2 = arith.constant 0 : index
    %c0_3 = arith.constant 0 : index
    %2 = vector.load %arg3[%c0_2, %c0_3] : memref<256x128xbf16, #tpu.memory_space<vmem>>, vector<256x128xbf16>
    %cst = arith.constant dense<0.000000e+00> : vector<256x128xf32>
    %3 = tpu.matmul %2, %1, %cst {dimension_numbers = #tpu.dot_dimension_numbers<[1], [0], [0], [1], [0, 0, 1, 1], [], []>} : vector<256x128xbf16>, vector<128x128xbf16>, vector<256x128xf32> -> vector<256x128xf32>
    %4 = vector.extract_strided_slice %3 {offsets = [0, 0], sizes = [128, 128], strides = [1, 1]} : vector<256x128xf32> to vector<128x128xf32>
    %5 = vector.extract_strided_slice %3 {offsets = [128, 0], sizes = [128, 128], strides = [1, 1]} : vector<256x128xf32> to vector<128x128xf32>
    %6 = arith.mulf %4, %4 : vector<128x128xf32>
    %7 = arith.mulf %5, %5 : vector<128x128xf32>
    %8 = arith.addf %6, %7 : vector<128x128xf32>
    %c0_4 = arith.constant 0 : index
    %c0_5 = arith.constant 0 : index
    %9 = vector.load %arg4[%c0_4, %c0_5] : memref<128x128xf32, #tpu.memory_space<vmem>>, vector<128x128xf32>
    %cst_6 = arith.constant dense<0.000000e+00> : vector<128x128xf32>
    %10 = tpu.matmul %9, %8, %cst_6 {dimension_numbers = #tpu.dot_dimension_numbers<[1], [0], [0], [1], [0, 0, 1, 1], [], []>} : vector<128x128xf32>, vector<128x128xf32>, vector<128x128xf32> -> vector<128x128xf32>
    %cst_7 = arith.constant 1.000000e-10 : f32
    %11 = vector.broadcast %cst_7 : f32 to vector<128x128xf32>
    %12 = arith.maximumf %10, %11 : vector<128x128xf32>
    %13 = math.log %12 : vector<128x128xf32>
    %cst_8 = arith.constant 0.434294492 : f32
    %14 = vector.broadcast %cst_8 : f32 to vector<128x128xf32>
    %15 = arith.mulf %13, %14 : vector<128x128xf32>
    %c0_9 = arith.constant 0 : index
    %c0_10 = arith.constant 0 : index
    %c0_11 = arith.constant 0 : index
    %16 = vector.load %arg5[%c0_9, %c0_10, %c0_11] : memref<1x128x128xf32, #tpu.memory_space<vmem>>, vector<1x128x128xf32>
    %17 = vector.shape_cast %16 : vector<1x128x128xf32> to vector<128x128xf32>
    %18 = vector.shape_cast %15 : vector<128x128xf32> to vector<1x128x128xf32>
    tpu.vector_store %arg5[%c0_9, %c0_10, %c0_11], %18 {strides = array<i32>} : memref<1x128x128xf32, #tpu.memory_space<vmem>>, vector<1x128x128xf32>,
    return
  }
  func.func @transform_0(%arg0: i32, %arg1: i32) -> (i32, i32, i32) {
    %c0_i32 = arith.constant 0 : i32
    %c0_i32_0 = arith.constant 0 : i32
    return %arg0, %c0_i32, %arg1 : i32, i32, i32
  }
  func.func @transform_1(%arg0: i32, %arg1: i32) -> (i32, i32) {
    %c0_i32 = arith.constant 0 : i32
    %c0_i32_0 = arith.constant 0 : i32
    %c0_i32_1 = arith.constant 0 : i32
    return %c0_i32, %c0_i32_0 : i32, i32
  }
  func.func @transform_2(%arg0: i32, %arg1: i32) -> (i32, i32) {
    %c0_i32 = arith.constant 0 : i32
    %c0_i32_0 = arith.constant 0 : i32
    %c0_i32_1 = arith.constant 0 : i32
    return %c0_i32, %c0_i32_0 : i32, i32
  }
  func.func @transform_3(%arg0: i32, %arg1: i32) -> (i32, i32, i32) {
    %c0_i32 = arith.constant 0 : i32
    %c0_i32_0 = arith.constant 0 : i32
    return %arg0, %c0_i32, %arg1 : i32, i32, i32
  }
}

</mosaic_0001>

<llo_original>
// kernel: run.1
$region0: #{run.1}
  #allocation0 [shape = 'u32[]', space=smem, size = 0x4, offset = 0x4, fixed_abs, tag = 'smem constant byte address 0x4 - core index']
  #allocation1 [shape = 'u32[72,128]{1,0:T(1,128)}', space=vmem, size = 0x9000, scoped, tag = 'internal scratch']
  %s0 = inlined_call_operand.vmem [shape: bf16[2,128,128], index: 0, kind: input, shape index: {}]
  %s1 = inlined_call_operand.vmem [shape: bf16[256,128], index: 1, kind: input, shape index: {}]
  %s2 = inlined_call_operand.vmem [shape: f32[128,128], index: 2, kind: input, shape index: {}]
  %s3 = inlined_call_operand.vmem [shape: f32[2,128,128], index: 3, kind: output, shape index: {}]
  %s4 = sld [smem:[#allocation0]]
  $region45: #{run.1} parent=0
    _
  %s6 = ssub.s32 1, %s4
  %s7 = scalar_select 0, %s6, %s4
  loop: start=0, step=1, limit=4
  $region2: #{run.1} parent=0 // loop_pre_header
    _
  $region3: #{run.1} parent=0 // loop_header
    %s9 = sphi 0, %s13
    %p10 = scmp.ge.s32.totalorder %s9, 4
    %s16 = sphi 0, %s28
    %s17 = sphi 0, %s24
    %s18 = sphi 0, %s16
    %s19 = sphi 0, %s17
    %s20 = sphi 0, %s18
    %s21 = sphi 0, %s19
    %s33 = sphi 0, %s35
    %s36 = sphi 0, %s33
    %s37 = sphi 0, %s36
    %s53 = sphi 0, %s37
    %s57 = sphi 0, %s57
    %s59 = sphi 0, %s57
    %s60 = sphi 0, %s59
    %s74 = sphi 0, %s60
    %s78 = sphi 0, %s78
    %s80 = sphi 0, %s78
    %s81 = sphi 0, %s80
    %s95 = sphi 0, %s81
    %s103 = sphi 0, %s105
    %s106 = sphi 0, %s103
    %s107 = sphi 0, %s106
    %s123 = sphi 0, %s107
  $region4: #{run.1} parent=0 // loop_header_branch
    %12 = sbr.rel (%p10) target = $region8
  $region5: #{run.1} parent=0 // loop_body
    %s14 = ssub.s32 %s9, 1
    %s15 = ssub.s32 %s9, 2
    %s22 = sadd.s32 1, %s17
    %p23 = scmp.ge.s32.totalorder %s22, 1
    %s24 = scalar_select %p23, 0, %s22
    %s25 = sadd.s32 1, %s16
    %s26 = scalar_select %p23, %s25, %s16
    %p27 = scmp.ge.s32.totalorder %s26, 2
    %s28 = scalar_select %p27, 0, %s26
    %s29 = ssub.s32 %s16, %s28
    %s30 = ssub.s32 %s17, %s24
    %s31 = sor.u32 %s29, %s30
    %p32 = scmp.eq.s32.totalorder %s31, 0
    %s34 = sadd.s32 %s33, 1
    %s35 = scalar_select %p32, %s33, %s34
    %p38 = pneg %p32
    %p39 = scmp.eq.s32.totalorder %s9, 1
    %p40 = por %p38, %p39
    %p41 = scmp.ne.s32.totalorder %s33, %s36
    %p42 = scmp.eq.s32.totalorder %s9, 0
    %p43 = por %p41, %p42
    %p44 = scmp.ne.s32.totalorder %s33, %s36
    %p45 = scmp.eq.s32.totalorder %s14, 1
    %p46 = por %p44, %p45
    %p47 = scmp.ne.s32.totalorder %s36, %s37
    %p48 = scmp.eq.s32.totalorder %s14, 0
    %p49 = por %p47, %p48
    %p50 = scmp.ne.s32.totalorder %s36, %s37
    %p51 = scmp.eq.s32.totalorder %s15, 1
    %p52 = por %p50, %p51
    %p54 = scmp.ne.s32.totalorder %s37, %s53
    %p55 = scmp.eq.s32.totalorder %s15, 0
    %p56 = por %p54, %p55
    %s58 = sadd.s32 %s57, 1
    %p61 = scmp.eq.s32.totalorder %s9, 1
    %p62 = scmp.ne.s32.totalorder %s57, %s59
    %p63 = scmp.eq.s32.totalorder %s9, 0
    %p64 = por %p62, %p63
    %p65 = scmp.ne.s32.totalorder %s57, %s59
    %p66 = scmp.eq.s32.totalorder %s14, 1
    %p67 = por %p65, %p66
    %p68 = scmp.ne.s32.totalorder %s59, %s60
    %p69 = scmp.eq.s32.totalorder %s14, 0
    %p70 = por %p68, %p69
    %p71 = scmp.ne.s32.totalorder %s59, %s60
    %p72 = scmp.eq.s32.totalorder %s15, 1
    %p73 = por %p71, %p72
    %p75 = scmp.ne.s32.totalorder %s60, %s74
    %p76 = scmp.eq.s32.totalorder %s15, 0
    %p77 = por %p75, %p76
    %s79 = sadd.s32 %s78, 1
    %p82 = scmp.eq.s32.totalorder %s9, 1
    %p83 = scmp.ne.s32.totalorder %s78, %s80
    %p84 = scmp.eq.s32.totalorder %s9, 0
    %p85 = por %p83, %p84
    %p86 = scmp.ne.s32.totalorder %s78, %s80
    %p87 = scmp.eq.s32.totalorder %s14, 1
    %p88 = por %p86, %p87
    %p89 = scmp.ne.s32.totalorder %s80, %s81
    %p90 = scmp.eq.s32.totalorder %s14, 0
    %p91 = por %p89, %p90
    %p92 = scmp.ne.s32.totalorder %s80, %s81
    %p93 = scmp.eq.s32.totalorder %s15, 1
    %p94 = por %p92, %p93
    %p96 = scmp.ne.s32.totalorder %s81, %s95
    %p97 = scmp.eq.s32.totalorder %s15, 0
    %p98 = por %p96, %p97
    %s99 = ssub.s32 %s16, %s28
    %s100 = ssub.s32 %s17, %s24
    %s101 = sor.u32 %s99, %s100
    %p102 = scmp.eq.s32.totalorder %s101, 0
    %s104 = sadd.s32 %s103, 1
    %s105 = scalar_select %p102, %s103, %s104
    %p108 = pneg %p102
    %p109 = scmp.eq.s32.totalorder %s9, 1
    %p110 = por %p108, %p109
    %p111 = scmp.ne.s32.totalorder %s103, %s106
    %p112 = scmp.eq.s32.totalorder %s9, 0
    %p113 = por %p111, %p112
    %p114 = scmp.ne.s32.totalorder %s103, %s106
    %p115 = scmp.eq.s32.totalorder %s14, 1
    %p116 = por %p114, %p115
    %p117 = scmp.ne.s32.totalorder %s106, %s107
    %p118 = scmp.eq.s32.totalorder %s14, 0
    %p119 = por %p117, %p118
    %p120 = scmp.ne.s32.totalorder %s106, %s107
    %p121 = scmp.eq.s32.totalorder %s15, 1
    %p122 = por %p120, %p121
    %p124 = scmp.ne.s32.totalorder %s107, %s123
    %p125 = scmp.eq.s32.totalorder %s15, 0
    %p126 = por %p124, %p125
    %p127 = scmp.le.s32.totalorder 1, %s9
    %p128 = scmp.lt.s32.totalorder %s9, 3
    %p129 = pnand %p127, %p128
    %p130 = pneg %p129
    // Predicated region
    $region9: #{run.1} parent=5 // pred_check
      _
    $region10: #{run.1} parent=5 // pred_check_branch
      %132 = sbr.rel (%p129) target = $region12
    $region11: #{run.1} parent=5 // pred_region
      %s133 = ssub.s32 %s9, 1
      // Predicated region
      $region13: #{run.1} parent=11 // pred_check
        %p134 = pneg %p70
      $region14: #{run.1} parent=11 // pred_check_branch
        %136 = sbr.rel (%p134) target = $region16
      $region15: #{run.1} parent=11 // pred_region
        _
      $region16: #{run.1} parent=11 // pred_fallthru
        _
      // Predicated region
      $region17: #{run.1} parent=11 // pred_check
        %p137 = pneg %p91
      $region18: #{run.1} parent=11 // pred_check_branch
        %139 = sbr.rel (%p137) target = $region20
      $region19: #{run.1} parent=11 // pred_region
        _
      $region20: #{run.1} parent=11 // pred_fallthru
        _
    $region12: #{run.1} parent=5 // pred_fallthru
      _
    %p140 = scmp.lt.s32.totalorder %s9, 2
    // Predicated region
    $region21: #{run.1} parent=5 // pred_check
      %p141 = pneg %p140
    $region22: #{run.1} parent=5 // pred_check_branch
      %143 = sbr.rel (%p141) target = $region24
    $region23: #{run.1} parent=5 // pred_region
      // Predicated region
      $region25: #{run.1} parent=23 // pred_check
        %p144 = pneg %p43
      $region26: #{run.1} parent=23 // pred_check_branch
        %146 = sbr.rel (%p144) target = $region28
      $region27: #{run.1} parent=23 // pred_region
        %p147 = scmp.lt.s32.totalorder %s16, 1
        %s148 = scalar_select %p147, %s16, 1
        %p149 = scmp.lt.s32.totalorder %s17, 0
        %s150 = scalar_select %p149, %s17, 0
        %s151 = smul.addr %s148, 16
        %s152 = sadd.s32 %s150, %s151
        %s153 = smul.addr %s152, 4
        %s154 = scalar_lea.vmem %s0, %s153
      $region28: #{run.1} parent=23 // pred_fallthru
        _
    $region24: #{run.1} parent=5 // pred_fallthru
      _
    %p155 = scmp.le.s32.totalorder 1, %s9
    %p156 = scmp.lt.s32.totalorder %s9, 3
    %p157 = pnand %p155, %p156
    %p158 = pneg %p157
    // Predicated region
    $region29: #{run.1} parent=5 // pred_check
      _
    $region30: #{run.1} parent=5 // pred_check_branch
      %160 = sbr.rel (%p157) target = $region32
    $region31: #{run.1} parent=5 // pred_region
      %s161 = ssub.s32 %s9, 1
      %p162 = scmp.lt.s32.totalorder %s18, 1
      %s163 = scalar_select %p162, %s18, 1
      %p164 = scmp.lt.s32.totalorder %s19, 0
      %s165 = scalar_select %p164, %s19, 0
      %s166 = smul.addr %s163, 16
      %s167 = sadd.s32 %s165, %s166
      %s168 = smul.addr %s167, 4
      %s169 = scalar_lea.vmem %s0, %s168
      %p170 = pneg %p49
      %p171 = pneg %p46
      %p172 = pneg %p70
      %p173 = pneg %p67
      %p174 = pneg %p91
      %p175 = pneg %p88
      %p176 = pneg %p119
      %p177 = pneg %p116
      %p178 = scmp.lt.s32.totalorder %s18, 1
      %s179 = scalar_select %p178, %s18, 1
      %p180 = scmp.lt.s32.totalorder %s19, 0
      %s181 = scalar_select %p180, %s19, 0
      %s182 = smul.addr %s179, 16
      %s183 = sadd.s32 %s181, %s182
      %s184 = smul.addr %s183, 8
      %s185 = scalar_lea.vmem %s3, %s184
      %p186 = scmp.lt.s32.totalorder %s18, 1
      %s187 = scalar_select %p186, %s18, 1
      %p188 = scmp.lt.s32.totalorder %s19, 0
      %s189 = scalar_select %p188, %s19, 0
      %s190 = smul.addr %s187, 16
      %s191 = sadd.s32 %s189, %s190
      %s192 = smul.addr %s191, 4
      %s193 = scalar_lea.vmem %s0, %s192
      %p194 = scmp.lt.s32.totalorder %s18, 1
      %s195 = scalar_select %p194, %s18, 1
      %p196 = scmp.lt.s32.totalorder %s19, 0
      %s197 = scalar_select %p196, %s19, 0
      %s198 = smul.addr %s195, 16
      %s199 = sadd.s32 %s197, %s198
      %s200 = smul.addr %s199, 8
      %s201 = scalar_lea.vmem %s3, %s200
      %v202 = vld [vmem:[%s193] sm:$0xf]
      %v203 = vld [vmem:[%s193 + $0x4] sm:$0xf]
      %v204 = vld [vmem:[%s193 + $0x8] sm:$0xf]
      %v205 = vld [vmem:[%s193 + $0xc] sm:$0xf]
      %v206 = vld [vmem:[%s193 + $0x10] sm:$0xf]
      %v207 = vld [vmem:[%s193 + $0x14] sm:$0xf]
      %v208 = vld [vmem:[%s193 + $0x18] sm:$0xf]
      %v209 = vld [vmem:[%s193 + $0x1c] sm:$0xf]
      %v210 = vld [vmem:[%s193 + $0x20] sm:$0xf]
      %v211 = vld [vmem:[%s193 + $0x24] sm:$0xf]
      %v212 = vld [vmem:[%s193 + $0x28] sm:$0xf]
      %v213 = vld [vmem:[%s193 + $0x2c] sm:$0xf]
      %v214 = vld [vmem:[%s193 + $0x30] sm:$0xf]
      %v215 = vld [vmem:[%s193 + $0x34] sm:$0xf]
      %v216 = vld [vmem:[%s193 + $0x38] sm:$0xf]
      %v217 = vld [vmem:[%s193 + $0x3c] sm:$0xf]
      %v218 = vld [vmem:[%s1] sm:$0xf]
      %v219 = vld [vmem:[%s1 + $0x4] sm:$0xf]
      %v220 = vld [vmem:[%s1 + $0x8] sm:$0xf]
      %v221 = vld [vmem:[%s1 + $0xc] sm:$0xf]
      %v222 = vld [vmem:[%s1 + $0x10] sm:$0xf]
      %v223 = vld [vmem:[%s1 + $0x14] sm:$0xf]
      %v224 = vld [vmem:[%s1 + $0x18] sm:$0xf]
      %v225 = vld [vmem:[%s1 + $0x1c] sm:$0xf]
      %v226 = vld [vmem:[%s1 + $0x20] sm:$0xf]
      %v227 = vld [vmem:[%s1 + $0x24] sm:$0xf]
      %v228 = vld [vmem:[%s1 + $0x28] sm:$0xf]
      %v229 = vld [vmem:[%s1 + $0x2c] sm:$0xf]
      %v230 = vld [vmem:[%s1 + $0x30] sm:$0xf]
      %v231 = vld [vmem:[%s1 + $0x34] sm:$0xf]
      %v232 = vld [vmem:[%s1 + $0x38] sm:$0xf]
      %v233 = vld [vmem:[%s1 + $0x3c] sm:$0xf]
      %v234 = vld [vmem:[%s1 + $0x40] sm:$0xf]
      %v235 = vld [vmem:[%s1 + $0x44] sm:$0xf]
      %v236 = vld [vmem:[%s1 + $0x48] sm:$0xf]
      %v237 = vld [vmem:[%s1 + $0x4c] sm:$0xf]
      %v238 = vld [vmem:[%s1 + $0x50] sm:$0xf]
      %v239 = vld [vmem:[%s1 + $0x54] sm:$0xf]
      %v240 = vld [vmem:[%s1 + $0x58] sm:$0xf]
      %v241 = vld [vmem:[%s1 + $0x5c] sm:$0xf]
      %v242 = vld [vmem:[%s1 + $0x60] sm:$0xf]
      %v243 = vld [vmem:[%s1 + $0x64] sm:$0xf]
      %v244 = vld [vmem:[%s1 + $0x68] sm:$0xf]
      %v245 = vld [vmem:[%s1 + $0x6c] sm:$0xf]
      %v246 = vld [vmem:[%s1 + $0x70] sm:$0xf]
      %v247 = vld [vmem:[%s1 + $0x74] sm:$0xf]
      %v248 = vld [vmem:[%s1 + $0x78] sm:$0xf]
      %v249 = vld [vmem:[%s1 + $0x7c] sm:$0xf]
      %v282 = vunpack.c.l.b16 %v218
      %v283 = vunpack.c.l.b16 %v219
      %v284 = vunpack.c.l.b16 %v220
      %v285 = vunpack.c.l.b16 %v221
      %v286 = vunpack.c.l.b16 %v222
      %v287 = vunpack.c.l.b16 %v223
      %v288 = vunpack.c.l.b16 %v224
      %v289 = vunpack.c.l.b16 %v225
      %v290 = vunpack.c.l.b16 %v226
      %v291 = vunpack.c.l.b16 %v227
      %v292 = vunpack.c.l.b16 %v228
      %v293 = vunpack.c.l.b16 %v229
      %v294 = vunpack.c.l.b16 %v230
      %v295 = vunpack.c.l.b16 %v231
      %v296 = vunpack.c.l.b16 %v232
      %v297 = vunpack.c.l.b16 %v233
      %v298 = vunpack.c.l.b16 %v234
      %v299 = vunpack.c.l.b16 %v235
      %v300 = vunpack.c.l.b16 %v236
      %v301 = vunpack.c.l.b16 %v237
      %v302 = vunpack.c.l.b16 %v238
      %v303 = vunpack.c.l.b16 %v239
      %v304 = vunpack.c.l.b16 %v240
      %v305 = vunpack.c.l.b16 %v241
      %v306 = vunpack.c.l.b16 %v242
      %v307 = vunpack.c.l.b16 %v243
      %v308 = vunpack.c.l.b16 %v244
      %v309 = vunpack.c.l.b16 %v245
      %v310 = vunpack.c.l.b16 %v246
      %v311 = vunpack.c.l.b16 %v247
      %v312 = vunpack.c.l.b16 %v248
      %v313 = vunpack.c.l.b16 %v249
      %v314 = vpack.c.b16 %v283, %v282
      %v315 = vpack.c.b16 %v285, %v284
      %v316 = vpack.c.b16 %v287, %v286
      %v317 = vpack.c.b16 %v289, %v288
      %v318 = vpack.c.b16 %v291, %v290
      %v319 = vpack.c.b16 %v293, %v292
      %v320 = vpack.c.b16 %v295, %v294
      %v321 = vpack.c.b16 %v297, %v296
      %v322 = vpack.c.b16 %v299, %v298
      %v323 = vpack.c.b16 %v301, %v300
      %v324 = vpack.c.b16 %v303, %v302
      %v325 = vpack.c.b16 %v305, %v304
      %v326 = vpack.c.b16 %v307, %v306
      %v327 = vpack.c.b16 %v309, %v308
      %v328 = vpack.c.b16 %v311, %v310
      %v329 = vpack.c.b16 %v313, %v312
      %v362 = vunpack.c.l.b16 %v202
      %v363 = vunpack.c.l.b16 %v203
      %v364 = vunpack.c.l.b16 %v204
      %v365 = vunpack.c.l.b16 %v205
      %v366 = vunpack.c.l.b16 %v206
      %v367 = vunpack.c.l.b16 %v207
      %v368 = vunpack.c.l.b16 %v208
      %v369 = vunpack.c.l.b16 %v209
      %v370 = vunpack.c.l.b16 %v210
      %v371 = vunpack.c.l.b16 %v211
      %v372 = vunpack.c.l.b16 %v212
      %v373 = vunpack.c.l.b16 %v213
      %v374 = vunpack.c.l.b16 %v214
      %v375 = vunpack.c.l.b16 %v215
      %v376 = vunpack.c.l.b16 %v216
      %v377 = vunpack.c.l.b16 %v217
      %v378 = vpack.c.b16 %v363, %v362
      %v379 = vpack.c.b16 %v365, %v364
      %v380 = vpack.c.b16 %v367, %v366
      %v381 = vpack.c.b16 %v369, %v368
      %v382 = vpack.c.b16 %v371, %v370
      %v383 = vpack.c.b16 %v373, %v372
      %v384 = vpack.c.b16 %v375, %v374
      %v385 = vpack.c.b16 %v377, %v376
      %394 = vmatpush.bf16.msra.mxu0 %v385
      %395 = vmatpush.bf16.msra.mxu0 %v384
      %396 = vmatpush.bf16.msra.mxu0 %v383
      %397 = vmatpush.bf16.msra.mxu0 %v382
      %398 = vmatpush.bf16.msra.mxu0 %v381
      %399 = vmatpush.bf16.msra.mxu0 %v380
      %400 = vmatpush.bf16.msra.mxu0 %v379
      %401 = vmatpush.bf16.msra.mxu0 %v378
      %402 = vmatmul.bf16.gmra.mxu0 %v314
      %v403 = vpop.f32.mrf.mxu0
      %v404 = vadd.f32 0.0, %v403
      %v405 = vpop.f32.mrf.mxu0
      %v406 = vadd.f32 0.0, %v405
      %407 = vmatmul.bf16.gmra.mxu0 %v315
      %v408 = vpop.f32.mrf.mxu0
      %v409 = vadd.f32 0.0, %v408
      %v410 = vpop.f32.mrf.mxu0
      %v411 = vadd.f32 0.0, %v410
      %412 = vmatmul.bf16.gmra.mxu0 %v316
      %v413 = vpop.f32.mrf.mxu0
      %v414 = vadd.f32 0.0, %v413
      %v415 = vpop.f32.mrf.mxu0
      %v416 = vadd.f32 0.0, %v415
      %417 = vmatmul.bf16.gmra.mxu0 %v317
      %v418 = vpop.f32.mrf.mxu0
      %v419 = vadd.f32 0.0, %v418
      %v420 = vpop.f32.mrf.mxu0
      %v421 = vadd.f32 0.0, %v420
      %422 = vmatmul.bf16.gmra.mxu0 %v318
      %v423 = vpop.f32.mrf.mxu0
      %v424 = vadd.f32 0.0, %v423
      %v425 = vpop.f32.mrf.mxu0
      %v426 = vadd.f32 0.0, %v425
      %427 = vmatmul.bf16.gmra.mxu0 %v319
      %v428 = vpop.f32.mrf.mxu0
      %v429 = vadd.f32 0.0, %v428
      %v430 = vpop.f32.mrf.mxu0
      %v431 = vadd.f32 0.0, %v430
      %432 = vmatmul.bf16.gmra.mxu0 %v320
      %v433 = vpop.f32.mrf.mxu0
      %v434 = vadd.f32 0.0, %v433
      %v435 = vpop.f32.mrf.mxu0
      %v436 = vadd.f32 0.0, %v435
      %437 = vmatmul.bf16.gmra.mxu0 %v321
      %v438 = vpop.f32.mrf.mxu0
      %v439 = vadd.f32 0.0, %v438
      %v440 = vpop.f32.mrf.mxu0
      %v441 = vadd.f32 0.0, %v440
      %442 = vmatmul.bf16.gmra.mxu0 %v322
      %v443 = vpop.f32.mrf.mxu0
      %v444 = vadd.f32 0.0, %v443
      %v445 = vpop.f32.mrf.mxu0
      %v446 = vadd.f32 0.0, %v445
      %447 = vmatmul.bf16.gmra.mxu0 %v323
      %v448 = vpop.f32.mrf.mxu0
      %v449 = vadd.f32 0.0, %v448
      %v450 = vpop.f32.mrf.mxu0
      %v451 = vadd.f32 0.0, %v450
      %452 = vmatmul.bf16.gmra.mxu0 %v324
      %v453 = vpop.f32.mrf.mxu0
      %v454 = vadd.f32 0.0, %v453
      %v455 = vpop.f32.mrf.mxu0
      %v456 = vadd.f32 0.0, %v455
      %457 = vmatmul.bf16.gmra.mxu0 %v325
      %v458 = vpop.f32.mrf.mxu0
      %v459 = vadd.f32 0.0, %v458
      %v460 = vpop.f32.mrf.mxu0
      %v461 = vadd.f32 0.0, %v460
      %462 = vmatmul.bf16.gmra.mxu0 %v326
      %v463 = vpop.f32.mrf.mxu0
      %v464 = vadd.f32 0.0, %v463
      %v465 = vpop.f32.mrf.mxu0
      %v466 = vadd.f32 0.0, %v465
      %467 = vmatmul.bf16.gmra.mxu0 %v327
      %v468 = vpop.f32.mrf.mxu0
      %v469 = vadd.f32 0.0, %v468
      %v470 = vpop.f32.mrf.mxu0
      %v471 = vadd.f32 0.0, %v470
      %472 = vmatmul.bf16.gmra.mxu0 %v328
      %v473 = vpop.f32.mrf.mxu0
      %v474 = vadd.f32 0.0, %v473
      %v475 = vpop.f32.mrf.mxu0
      %v476 = vadd.f32 0.0, %v475
      %477 = vmatmul.bf16.gmra.mxu0 %v329
      %v478 = vpop.f32.mrf.mxu0
      %v479 = vadd.f32 0.0, %v478
      %v480 = vpop.f32.mrf.mxu0
      %v481 = vadd.f32 0.0, %v480
      %482 = vdwg.mxu0
      %v483 = vmul.f32 %v404, %v404
      %v484 = vmul.f32 %v406, %v406
      %v485 = vmul.f32 %v409, %v409
      %v486 = vmul.f32 %v411, %v411
      %v487 = vmul.f32 %v414, %v414
      %v488 = vmul.f32 %v416, %v416
      %v489 = vmul.f32 %v419, %v419
      %v490 = vmul.f32 %v421, %v421
      %v491 = vmul.f32 %v424, %v424
      %v492 = vmul.f32 %v426, %v426
      %v493 = vmul.f32 %v429, %v429
      %v494 = vmul.f32 %v431, %v431
      %v495 = vmul.f32 %v434, %v434
      %v496 = vmul.f32 %v436, %v436
      %v497 = vmul.f32 %v439, %v439
      %v498 = vmul.f32 %v441, %v441
      %v499 = vmul.f32 %v444, %v444
      %v500 = vmul.f32 %v446, %v446
      %v501 = vmul.f32 %v449, %v449
      %v502 = vmul.f32 %v451, %v451
      %v503 = vmul.f32 %v454, %v454
      %v504 = vmul.f32 %v456, %v456
      %v505 = vmul.f32 %v459, %v459
      %v506 = vmul.f32 %v461, %v461
      %v507 = vmul.f32 %v464, %v464
      %v508 = vmul.f32 %v466, %v466
      %v509 = vmul.f32 %v469, %v469
      %v510 = vmul.f32 %v471, %v471
      %v511 = vmul.f32 %v474, %v474
      %v512 = vmul.f32 %v476, %v476
      %v513 = vmul.f32 %v479, %v479
      %v514 = vmul.f32 %v481, %v481
      %v515 = vadd.f32 %v483, %v499
      %v516 = vadd.f32 %v484, %v500
      %v517 = vadd.f32 %v485, %v501
      %v518 = vadd.f32 %v486, %v502
      %v519 = vadd.f32 %v487, %v503
      %v520 = vadd.f32 %v488, %v504
      %v521 = vadd.f32 %v489, %v505
      %v522 = vadd.f32 %v490, %v506
      %v523 = vadd.f32 %v491, %v507
      %v524 = vadd.f32 %v492, %v508
      %v525 = vadd.f32 %v493, %v509
      %v526 = vadd.f32 %v494, %v510
      %v527 = vadd.f32 %v495, %v511
      %v528 = vadd.f32 %v496, %v512
      %v529 = vadd.f32 %v497, %v513
      %v530 = vadd.f32 %v498, %v514
      %v531 = vld [vmem:[%s2] sm:$0xff]
      %v532 = vld [vmem:[%s2 + $0x8] sm:$0xff]
      %v533 = vld [vmem:[%s2 + $0x10] sm:$0xff]
      %v534 = vld [vmem:[%s2 + $0x18] sm:$0xff]
      %v535 = vld [vmem:[%s2 + $0x20] sm:$0xff]
      %v536 = vld [vmem:[%s2 + $0x28] sm:$0xff]
      %v537 = vld [vmem:[%s2 + $0x30] sm:$0xff]
      %v538 = vld [vmem:[%s2 + $0x38] sm:$0xff]
      %v539 = vld [vmem:[%s2 + $0x40] sm:$0xff]
      %v540 = vld [vmem:[%s2 + $0x48] sm:$0xff]
      %v541 = vld [vmem:[%s2 + $0x50] sm:$0xff]
      %v542 = vld [vmem:[%s2 + $0x58] sm:$0xff]
      %v543 = vld [vmem:[%s2 + $0x60] sm:$0xff]
      %v544 = vld [vmem:[%s2 + $0x68] sm:$0xff]
      %v545 = vld [vmem:[%s2 + $0x70] sm:$0xff]
      %v546 = vld [vmem:[%s2 + $0x78] sm:$0xff]
      %547 = vmatpush.msra.mxu0 %v530
      %548 = vmatpush.msra.mxu0 %v529
      %549 = vmatpush.msra.mxu0 %v528
      %550 = vmatpush.msra.mxu0 %v527
      %551 = vmatpush.msra.mxu0 %v526
      %552 = vmatpush.msra.mxu0 %v525
      %553 = vmatpush.msra.mxu0 %v524
      %554 = vmatpush.msra.mxu0 %v523
      %555 = vmatpush.msra.mxu0 %v522
      %556 = vmatpush.msra.mxu0 %v521
      %557 = vmatpush.msra.mxu0 %v520
      %558 = vmatpush.msra.mxu0 %v519
      %559 = vmatpush.msra.mxu0 %v518
      %560 = vmatpush.msra.mxu0 %v517
      %561 = vmatpush.msra.mxu0 %v516
      %562 = vmatpush.msra.mxu0 %v515
      %563 = vmatmul.f32.gmra.mxu0 %v531
      %v564 = vpop.f32.mrf.mxu0
      %v565 = vadd.f32 0.0, %v564
      %566 = vmatmul.f32.gmra.mxu0 %v532
      %v567 = vpop.f32.mrf.mxu0
      %v568 = vadd.f32 0.0, %v567
      %569 = vmatmul.f32.gmra.mxu0 %v533
      %v570 = vpop.f32.mrf.mxu0
      %v571 = vadd.f32 0.0, %v570
      %572 = vmatmul.f32.gmra.mxu0 %v534
      %v573 = vpop.f32.mrf.mxu0
      %v574 = vadd.f32 0.0, %v573
      %575 = vmatmul.f32.gmra.mxu0 %v535
      %v576 = vpop.f32.mrf.mxu0
      %v577 = vadd.f32 0.0, %v576
      %578 = vmatmul.f32.gmra.mxu0 %v536
      %v579 = vpop.f32.mrf.mxu0
      %v580 = vadd.f32 0.0, %v579
      %581 = vmatmul.f32.gmra.mxu0 %v537
      %v582 = vpop.f32.mrf.mxu0
      %v583 = vadd.f32 0.0, %v582
      %584 = vmatmul.f32.gmra.mxu0 %v538
      %v585 = vpop.f32.mrf.mxu0
      %v586 = vadd.f32 0.0, %v585
      %587 = vmatmul.f32.gmra.mxu0 %v539
      %v588 = vpop.f32.mrf.mxu0
      %v589 = vadd.f32 0.0, %v588
      %590 = vmatmul.f32.gmra.mxu0 %v540
      %v591 = vpop.f32.mrf.mxu0
      %v592 = vadd.f32 0.0, %v591
      %593 = vmatmul.f32.gmra.mxu0 %v541
      %v594 = vpop.f32.mrf.mxu0
      %v595 = vadd.f32 0.0, %v594
      %596 = vmatmul.f32.gmra.mxu0 %v542
      %v597 = vpop.f32.mrf.mxu0
      %v598 = vadd.f32 0.0, %v597
      %599 = vmatmul.f32.gmra.mxu0 %v543
      %v600 = vpop.f32.mrf.mxu0
      %v601 = vadd.f32 0.0, %v600
      %602 = vmatmul.f32.gmra.mxu0 %v544
      %v603 = vpop.f32.mrf.mxu0
      %v604 = vadd.f32 0.0, %v603
      %605 = vmatmul.f32.gmra.mxu0 %v545
      %v606 = vpop.f32.mrf.mxu0
      %v607 = vadd.f32 0.0, %v606
      %608 = vmatmul.f32.gmra.mxu0 %v546
      %v609 = vpop.f32.mrf.mxu0
      %v610 = vadd.f32 0.0, %v609
      %611 = vdwg.mxu0
      %v612 = vmax.f32 %v565, 1e-10
      %v613 = vmax.f32 %v568, 1e-10
      %v614 = vmax.f32 %v571, 1e-10
      %v615 = vmax.f32 %v574, 1e-10
      %v616 = vmax.f32 %v577, 1e-10
      %v617 = vmax.f32 %v580, 1e-10
      %v618 = vmax.f32 %v583, 1e-10
      %v619 = vmax.f32 %v586, 1e-10
      %v620 = vmax.f32 %v589, 1e-10
      %v621 = vmax.f32 %v592, 1e-10
      %v622 = vmax.f32 %v595, 1e-10
      %v623 = vmax.f32 %v598, 1e-10
      %v624 = vmax.f32 %v601, 1e-10
      %v625 = vmax.f32 %v604, 1e-10
      %v626 = vmax.f32 %v607, 1e-10
      %v627 = vmax.f32 %v610, 1e-10
      %v628 = vlog2.pop %v612
      %v629 = vmul.f32 %v628, 0.6931472
      %v630 = vlog2.pop %v613
      %v631 = vmul.f32 %v630, 0.6931472
      %v632 = vlog2.pop %v614
      %v633 = vmul.f32 %v632, 0.6931472
      %v634 = vlog2.pop %v615
      %v635 = vmul.f32 %v634, 0.6931472
      %v636 = vlog2.pop %v616
      %v637 = vmul.f32 %v636, 0.6931472
      %v638 = vlog2.pop %v617
      %v639 = vmul.f32 %v638, 0.6931472
      %v640 = vlog2.pop %v618
      %v641 = vmul.f32 %v640, 0.6931472
      %v642 = vlog2.pop %v619
      %v643 = vmul.f32 %v642, 0.6931472
      %v644 = vlog2.pop %v620
      %v645 = vmul.f32 %v644, 0.6931472
      %v646 = vlog2.pop %v621
      %v647 = vmul.f32 %v646, 0.6931472
      %v648 = vlog2.pop %v622
      %v649 = vmul.f32 %v648, 0.6931472
      %v650 = vlog2.pop %v623
      %v651 = vmul.f32 %v650, 0.6931472
      %v652 = vlog2.pop %v624
      %v653 = vmul.f32 %v652, 0.6931472
      %v654 = vlog2.pop %v625
      %v655 = vmul.f32 %v654, 0.6931472
      %v656 = vlog2.pop %v626
      %v657 = vmul.f32 %v656, 0.6931472
      %v658 = vlog2.pop %v627
      %v659 = vmul.f32 %v658, 0.6931472
      %v660 = vmul.f32 %v629, 0.4342945
      %v661 = vmul.f32 %v631, 0.4342945
      %v662 = vmul.f32 %v633, 0.4342945
      %v663 = vmul.f32 %v635, 0.4342945
      %v664 = vmul.f32 %v637, 0.4342945
      %v665 = vmul.f32 %v639, 0.4342945
      %v666 = vmul.f32 %v641, 0.4342945
      %v667 = vmul.f32 %v643, 0.4342945
      %v668 = vmul.f32 %v645, 0.4342945
      %v669 = vmul.f32 %v647, 0.4342945
      %v670 = vmul.f32 %v649, 0.4342945
      %v671 = vmul.f32 %v651, 0.4342945
      %v672 = vmul.f32 %v653, 0.4342945
      %v673 = vmul.f32 %v655, 0.4342945
      %v674 = vmul.f32 %v657, 0.4342945
      %v675 = vmul.f32 %v659, 0.4342945
      %676 = vst [vmem:[%s201] sm:$0xff] %v660
      %677 = vst [vmem:[%s201 + $0x8] sm:$0xff] %v661
      %678 = vst [vmem:[%s201 + $0x10] sm:$0xff] %v662
      %679 = vst [vmem:[%s201 + $0x18] sm:$0xff] %v663
      %680 = vst [vmem:[%s201 + $0x20] sm:$0xff] %v664
      %681 = vst [vmem:[%s201 + $0x28] sm:$0xff] %v665
      %682 = vst [vmem:[%s201 + $0x30] sm:$0xff] %v666
      %683 = vst [vmem:[%s201 + $0x38] sm:$0xff] %v667
      %684 = vst [vmem:[%s201 + $0x40] sm:$0xff] %v668
      %685 = vst [vmem:[%s201 + $0x48] sm:$0xff] %v669
      %686 = vst [vmem:[%s201 + $0x50] sm:$0xff] %v670
      %687 = vst [vmem:[%s201 + $0x58] sm:$0xff] %v671
      %688 = vst [vmem:[%s201 + $0x60] sm:$0xff] %v672
      %689 = vst [vmem:[%s201 + $0x68] sm:$0xff] %v673
      %690 = vst [vmem:[%s201 + $0x70] sm:$0xff] %v674
      %691 = vst [vmem:[%s201 + $0x78] sm:$0xff] %v675
      %p692 = scmp.lt.s32.totalorder %s18, 1
      %s693 = scalar_select %p692, %s18, 1
      %p694 = scmp.lt.s32.totalorder %s19, 0
      %s695 = scalar_select %p694, %s19, 0
      %s696 = smul.addr %s693, 16
      %s697 = sadd.s32 %s695, %s696
      %s698 = smul.addr %s697, 8
      %s699 = scalar_lea.vmem %s3, %s698
      // Predicated region
      $region33: #{run.1} parent=31 // pred_check
        %p700 = pneg %p116
      $region34: #{run.1} parent=31 // pred_check_branch
        %702 = sbr.rel (%p700) target = $region36
      $region35: #{run.1} parent=31 // pred_region
        _
      $region36: #{run.1} parent=31 // pred_fallthru
        _
    $region32: #{run.1} parent=5 // pred_fallthru
      _
    %p703 = scmp.le.s32.totalorder 2, %s9
    // Predicated region
    $region37: #{run.1} parent=5 // pred_check
      %p704 = pneg %p703
    $region38: #{run.1} parent=5 // pred_check_branch
      %706 = sbr.rel (%p704) target = $region40
    $region39: #{run.1} parent=5 // pred_region
      %s707 = ssub.s32 %s9, 2
      // Predicated region
      $region41: #{run.1} parent=39 // pred_check
        %p708 = pneg %p122
      $region42: #{run.1} parent=39 // pred_check_branch
        %710 = sbr.rel (%p708) target = $region44
      $region43: #{run.1} parent=39 // pred_region
        %p711 = scmp.lt.s32.totalorder %s20, 1
        %s712 = scalar_select %p711, %s20, 1
        %p713 = scmp.lt.s32.totalorder %s21, 0
        %s714 = scalar_select %p713, %s21, 0
        %s715 = smul.addr %s712, 16
        %s716 = sadd.s32 %s714, %s715
        %s717 = smul.addr %s716, 8
        %s718 = scalar_lea.vmem %s3, %s717
      $region44: #{run.1} parent=39 // pred_fallthru
        _
    $region40: #{run.1} parent=5 // pred_fallthru
      _
  $region6: #{run.1} parent=0 // loop_footer
    %s13 = sadd.s32 1, %s9
  $region7: #{run.1} parent=0 // loop_footer_branch
    %8 = sbr.rel target = $region3
  $region8: #{run.1} parent=0 // loop_exit
    _

</llo_original>
